<compile_context>
chip_gen: v7x
topology: tpu7x:2x2x1
jax: 0.10.0
libtpu: 0.0.40
codegen_flags: <defaults>
</compile_context>

<pallas_src>
import functools

import numpy as np
import jax
import jax.numpy as jnp
from jax.experimental import pallas as pl
from jax.experimental.pallas import tpu as pltpu


# ------------------------------ helpers ------------------------------------ #

_VMEM_LIMIT = 32 * 1024 * 1024              # legal on v5e/v6e (128 MiB phys) and v7x (64 MiB phys)
_FUSED_TABLE_BYTES_MAX = 8 * 1024 * 1024    # resident-table budget (v7x-friendly)


def _pairs(num_fields):
    return tuple((i, j) for i in range(num_fields - 1)
                 for j in range(i + 1, num_fields))


def _round_up(x, m):
    return ((x + m - 1) // m) * m


def _batch_tile(n_rows, row_bytes, vmem_budget):
    """Large fixed batch tile (<=1024 rows), multiple of 8 (or the full dim),
    >= 2 grid steps when n_rows >= 16 (v7x has 2 TensorCores), and the
    double-buffered working set kept under `vmem_budget`."""
    tb = min(1024, n_rows)
    if n_rows >= 16:
        tb = min(tb, _round_up(pl.cdiv(n_rows, 2), 8))   # guarantee >= 2 steps
    while tb > 8 and 2 * tb * row_bytes > vmem_budget:
        tb //= 2
    if tb % 8 != 0 and tb != n_rows:
        tb = _round_up(tb, 8)
    return max(tb, 1)


# --------------------- fused gather + multiply kernel ---------------------- #

def _ffm_fused_kernel(idx_ref, w_ref, o_ref, *, F, D, B, tb, pairs):
    # idx_ref: (B*F,) int32 in SMEM (scalar prefetch, flattened -> tiny SMEM pad)
    # w_ref:   (vocab, F*D) f32 in VMEM, resident across all grid steps
    # o_ref:   (tb, P*D) f32 output tile
    tile_start = pl.program_id(0) * tb

    def body(r, carry):
        b = tile_start + r
        b_safe = jnp.minimum(b, B - 1)          # clamp reads for the ragged tail
        # One lane-dense (1, F*D) slab per field: every table's embedding of
        # that field's (offset) index, read straight out of the resident table.
        slabs = [w_ref[pl.ds(idx_ref[b_safe * F + f], 1), :] for f in range(F)]
        # pair (i, j): xs[j][:, i] * xs[i][:, j]
        prods = [slabs[i][:, j * D:(j + 1) * D] * slabs[j][:, i * D:(i + 1) * D]
                 for (i, j) in pairs]
        row = jnp.concatenate(prods, axis=1)    # (1, P*D)

        @pl.when(b < B)                         # drop writes past the real batch
        def _():
            o_ref[pl.ds(r, 1), :] = row

        return carry

    jax.lax.fori_loop(0, tb, body, 0)


def _ffm_fused(idx, weights, pairs):
    B, F = idx.shape
    _, vocab, D = weights.shape
    P = len(pairs)
    W = P * D

    # One-time parameter re-layout (cacheable with the params in a real model):
    # (F, vocab, D) -> (vocab, F*D) so every vocab row is a lane-dense slab.
    w2 = jnp.transpose(weights, (1, 0, 2)).reshape(vocab, F * D)
    idx_flat = idx.reshape(-1).astype(jnp.int32)

    tb = _batch_tile(B, row_bytes=W * 4, vmem_budget=8 * 1024 * 1024)
    grid = (pl.cdiv(B, tb),)

    kernel = functools.partial(_ffm_fused_kernel, F=F, D=D, B=B, tb=tb,
                               pairs=tuple(pairs))
    cost = pl.CostEstimate(flops=B * P * D, transcendentals=0,
                           bytes_accessed=B * W * 4 + B * F * 4 + vocab * F * D * 4)

    out = pl.pallas_call(
        kernel,
        out_shape=jax.ShapeDtypeStruct((B, W), weights.dtype),
        grid_spec=pltpu.PrefetchScalarGridSpec(
            num_scalar_prefetch=1,
            grid=grid,
            in_specs=[pl.BlockSpec((vocab, F * D), lambda i, idx_ref: (0, 0))],
            out_specs=pl.BlockSpec((tb, W), lambda i, idx_ref: (i, 0)),
        ),
        compiler_params=pltpu.CompilerParams(
            dimension_semantics=("parallel",),
            vmem_limit_bytes=_VMEM_LIMIT),
        cost_estimate=cost,
    )(idx_flat, w2)
    return out                                   # (B, P*D)


# -------------------- fallback: XLA gather + lane-dense mul ----------------- #

def _ffm_mul_kernel(a_ref, b_ref, o_ref):
    o_ref[...] = a_ref[...] * b_ref[...]


def _ffm_fallback(idx, weights, pairs):
    B, F = idx.shape
    _, vocab, D = weights.shape
    P = len(pairs)
    i_idx = jnp.asarray([p[0] for p in pairs], jnp.int32)
    j_idx = jnp.asarray([p[1] for p in pairs], jnp.int32)

    # Gather exactly the needed off-diagonal slabs, already in (B, P, D):
    #   a[b, p] = weights[j_p][idx[b, i_p]]   (== xs[j][:, i])
    #   b[b, p] = weights[i_p][idx[b, j_p]]   (== xs[i][:, j])
    a = weights[j_idx[None, :], idx[:, i_idx]]
    b = weights[i_idx[None, :], idx[:, j_idx]]

    # Lane-dense layout: fold 8 batch rows per stored row when possible so the
    # kernel's last dim is a large multiple of 128 (no half-masked stores).
    if B % 8 == 0 and (8 * P * D) % 128 == 0:
        rows, width = B // 8, 8 * P * D
    else:
        rows, width = B, P * D
    a2 = a.reshape(rows, width)
    b2 = b.reshape(rows, width)

    tb = _batch_tile(rows, row_bytes=3 * width * 4, vmem_budget=24 * 1024 * 1024)
    grid = (pl.cdiv(rows, tb),)
    cost = pl.CostEstimate(flops=B * P * D, transcendentals=0,
                           bytes_accessed=3 * B * P * D * 4)

    out = pl.pallas_call(
        _ffm_mul_kernel,
        out_shape=jax.ShapeDtypeStruct((rows, width), weights.dtype),
        grid_spec=pl.GridSpec(
            grid=grid,
            in_specs=[pl.BlockSpec((tb, width), lambda i: (i, 0)),
                      pl.BlockSpec((tb, width), lambda i: (i, 0))],
            out_specs=pl.BlockSpec((tb, width), lambda i: (i, 0))),
        compiler_params=pltpu.CompilerParams(
            dimension_semantics=("parallel",),
            vmem_limit_bytes=_VMEM_LIMIT),
        cost_estimate=cost,
    )(a2, b2)
    return out.reshape(B, P * D)


# ----------------------------- JAX glue / setup ----------------------------- #

def make_params(field_dims, embed_dim, key):
    """Deterministic xavier_uniform init of F embedding tables: (F, vocab, D)."""
    vocab = int(np.sum(field_dims))
    F = len(field_dims)
    limit = float(np.sqrt(6.0 / (vocab + embed_dim)))
    keys = jax.random.split(key, F)
    weights = jnp.stack([
        jax.random.uniform(k, (vocab, embed_dim), jnp.float32, -limit, limit)
        for k in keys
    ])  # (F, vocab, D)
    offsets = jnp.asarray(
        np.concatenate([[0], np.cumsum(field_dims)[:-1]]).astype(np.int32))
    return weights, offsets


def ffm_forward(x, weights, offsets, *, force_fallback=False):
    """x: (B, F) int32; weights: (F, vocab, D); offsets: (F,). Returns (B, P, D)."""
    B, F = x.shape
    _, vocab, D = weights.shape
    idx = (x + offsets[None, :]).astype(jnp.int32)       # (B, F)
    pairs = _pairs(F)
    P = len(pairs)

    table_bytes = F * vocab * D * int(np.dtype(weights.dtype).itemsize)
    if (not force_fallback) and table_bytes <= _FUSED_TABLE_BYTES_MAX:
        out2 = _ffm_fused(idx, weights, pairs)           # (B, P*D)
    else:
        out2 = _ffm_fallback(idx, weights, pairs)        # (B, P*D)
    return out2.reshape(B, P, D)                         # free split -> torch layout


# ----------------------------------- main ----------------------------------- #

if __name__ == "__main__":
    field_dims = np.array([5, 7, 4, 6])                  # F = 4 fields, vocab = 22
    embed_dim = 32                                       # D
    batch = 8                                            # B

    key = jax.random.PRNGKey(0)
    k_w, k_x = jax.random.split(key)
    weights, offsets = make_params(field_dims, embed_dim, k_w)

    # Deterministic per-field-valid input indices (before offsets are added).
    cols = []
    keys = jax.random.split(k_x, len(field_dims))
    for f, fd in enumerate(field_dims):
        cols.append(jax.random.randint(keys[f], (batch,), 0, int(fd), jnp.int32))
    x = jnp.stack(cols, axis=1)                          # (B, F) int32

    out_fused = jax.block_until_ready(ffm_forward(x, weights, offsets))
    out_fallback = jax.block_until_ready(
        ffm_forward(x, weights, offsets, force_fallback=True))

    # Pure-JAX reference (mirrors the PyTorch forward exactly).
    idx = x + offsets[None, :]
    F = len(field_dims)
    xs_ref = [jnp.take(weights[t], idx, axis=0) for t in range(F)]
    ref_pairs = []
    for i in range(F - 1):
        for j in range(i + 1, F):
            ref_pairs.append(xs_ref[j][:, i] * xs_ref[i][:, j])
    ref = jnp.stack(ref_pairs, axis=1)                   # (B, P, D)

    assert out_fused.shape == ref.shape, (out_fused.shape, ref.shape)
    assert np.allclose(np.asarray(out_fused), np.asarray(ref), atol=1e-6), \
        "fused-path mismatch"
    assert np.allclose(np.asarray(out_fallback), np.asarray(ref), atol=1e-6), \
        "fallback-path mismatch"

    print("KERNEL_OK")
</pallas_src>

<mosaic_0001>
module attributes {stable_mosaic.version = 11 : i64} {
  func.func @_ffm_fused_kernel(%arg0: i32, %arg1: memref<32xi32, #tpu.memory_space<smem>>, %arg2: memref<22x128xf32, #tpu.memory_space<vmem>>, %arg3: memref<8x192xf32, #tpu.memory_space<vmem>>) attributes {dimension_semantics = [#tpu.dimension_semantics<parallel>], iteration_bounds = array<i64: 1>, scalar_prefetch = 1 : i64, scratch_operands = 0 : i64, tpu.core_type = #tpu.core_type<tc>, window_params = [{pipeline_mode = #tpu.pipeline_mode<synchronous>, transform_indices = @transform_0, window_bounds = array<i64: 22, 128>}, {transform_indices = @transform_1, window_bounds = array<i64: 8, 192>}]} {
    %c8_i32 = arith.constant 8 : i32
    %0 = arith.muli %arg0, %c8_i32 : i32
    %c0_i32 = arith.constant 0 : i32
    %c8_i32_0 = arith.constant 8 : i32
    %1 = arith.addi %c0_i32, %c8_i32_0 : i32
    %c1_i32 = arith.constant 1 : i32
    scf.for %arg4 = %c0_i32 to %1 step %c1_i32  : i32 {
      %2 = arith.addi %0, %arg4 : i32
      %c7_i32 = arith.constant 7 : i32
      %3 = arith.minsi %2, %c7_i32 : i32
      %c4_i32 = arith.constant 4 : i32
      %4 = arith.muli %3, %c4_i32 : i32
      %c0_i32_2 = arith.constant 0 : i32
      %5 = arith.addi %4, %c0_i32_2 : i32
      %6 = arith.index_cast %5 : i32 to index
      %7 = memref.load %arg1[%6] : memref<32xi32, #tpu.memory_space<smem>>
      %8 = arith.index_cast %7 : i32 to index
      %c0 = arith.constant 0 : index
      %9 = vector.load %arg2[%8, %c0] : memref<22x128xf32, #tpu.memory_space<vmem>>, vector<1x128xf32>
      %c4_i32_3 = arith.constant 4 : i32
      %10 = arith.muli %3, %c4_i32_3 : i32
      %c1_i32_4 = arith.constant 1 : i32
      %11 = arith.addi %10, %c1_i32_4 : i32
      %12 = arith.index_cast %11 : i32 to index
      %13 = memref.load %arg1[%12] : memref<32xi32, #tpu.memory_space<smem>>
      %14 = arith.index_cast %13 : i32 to index
      %c0_5 = arith.constant 0 : index
      %15 = vector.load %arg2[%14, %c0_5] : memref<22x128xf32, #tpu.memory_space<vmem>>, vector<1x128xf32>
      %c4_i32_6 = arith.constant 4 : i32
      %16 = arith.muli %3, %c4_i32_6 : i32
      %c2_i32 = arith.constant 2 : i32
      %17 = arith.addi %16, %c2_i32 : i32
      %18 = arith.index_cast %17 : i32 to index
      %19 = memref.load %arg1[%18] : memref<32xi32, #tpu.memory_space<smem>>
      %20 = arith.index_cast %19 : i32 to index
      %c0_7 = arith.constant 0 : index
      %21 = vector.load %arg2[%20, %c0_7] : memref<22x128xf32, #tpu.memory_space<vmem>>, vector<1x128xf32>
      %c4_i32_8 = arith.constant 4 : i32
      %22 = arith.muli %3, %c4_i32_8 : i32
      %c3_i32 = arith.constant 3 : i32
      %23 = arith.addi %22, %c3_i32 : i32
      %24 = arith.index_cast %23 : i32 to index
      %25 = memref.load %arg1[%24] : memref<32xi32, #tpu.memory_space<smem>>
      %26 = arith.index_cast %25 : i32 to index
      %c0_9 = arith.constant 0 : index
      %27 = vector.load %arg2[%26, %c0_9] : memref<22x128xf32, #tpu.memory_space<vmem>>, vector<1x128xf32>
      %28 = vector.extract_strided_slice %9 {offsets = [0, 32], sizes = [1, 32], strides = [1, 1]} : vector<1x128xf32> to vector<1x32xf32>
      %29 = vector.extract_strided_slice %15 {offsets = [0, 0], sizes = [1, 32], strides = [1, 1]} : vector<1x128xf32> to vector<1x32xf32>
      %30 = arith.mulf %28, %29 : vector<1x32xf32>
      %31 = vector.extract_strided_slice %9 {offsets = [0, 64], sizes = [1, 32], strides = [1, 1]} : vector<1x128xf32> to vector<1x32xf32>
      %32 = vector.extract_strided_slice %21 {offsets = [0, 0], sizes = [1, 32], strides = [1, 1]} : vector<1x128xf32> to vector<1x32xf32>
      %33 = arith.mulf %31, %32 : vector<1x32xf32>
      %34 = vector.extract_strided_slice %9 {offsets = [0, 96], sizes = [1, 32], strides = [1, 1]} : vector<1x128xf32> to vector<1x32xf32>
      %35 = vector.extract_strided_slice %27 {offsets = [0, 0], sizes = [1, 32], strides = [1, 1]} : vector<1x128xf32> to vector<1x32xf32>
      %36 = arith.mulf %34, %35 : vector<1x32xf32>
      %37 = vector.extract_strided_slice %15 {offsets = [0, 64], sizes = [1, 32], strides = [1, 1]} : vector<1x128xf32> to vector<1x32xf32>
      %38 = vector.extract_strided_slice %21 {offsets = [0, 32], sizes = [1, 32], strides = [1, 1]} : vector<1x128xf32> to vector<1x32xf32>
      %39 = arith.mulf %37, %38 : vector<1x32xf32>
      %40 = vector.extract_strided_slice %15 {offsets = [0, 96], sizes = [1, 32], strides = [1, 1]} : vector<1x128xf32> to vector<1x32xf32>
      %41 = vector.extract_strided_slice %27 {offsets = [0, 32], sizes = [1, 32], strides = [1, 1]} : vector<1x128xf32> to vector<1x32xf32>
      %42 = arith.mulf %40, %41 : vector<1x32xf32>
      %43 = vector.extract_strided_slice %21 {offsets = [0, 96], sizes = [1, 32], strides = [1, 1]} : vector<1x128xf32> to vector<1x32xf32>
      %44 = vector.extract_strided_slice %27 {offsets = [0, 64], sizes = [1, 32], strides = [1, 1]} : vector<1x128xf32> to vector<1x32xf32>
      %45 = arith.mulf %43, %44 : vector<1x32xf32>
      %46 = tpu.concatenate %30, %33, %36, %39, %42, %45 in 1 : vector<1x32xf32>, vector<1x32xf32>, vector<1x32xf32>, vector<1x32xf32>, vector<1x32xf32>, vector<1x32xf32> -> vector<1x192xf32>
      %c8_i32_10 = arith.constant 8 : i32
      %47 = arith.cmpi slt, %2, %c8_i32_10 : i32
      %48 = arith.extui %47 : i1 to i32
      %c0_i32_11 = arith.constant 0 : i32
      %49 = arith.cmpi ne, %48, %c0_i32_11 : i32
      scf.if %49 {
        %50 = arith.index_cast %arg4 : i32 to index
        %c0_12 = arith.constant 0 : index
        %51 = vector.load %arg3[%50, %c0_12] : memref<8x192xf32, #tpu.memory_space<vmem>>, vector<1x192xf32>
        tpu.vector_store %arg3[%50, %c0_12], %46 {strides = array<i32>} : memref<8x192xf32, #tpu.memory_space<vmem>>, vector<1x192xf32>,
      } else {
      }
    }
    %c8_i32_1 = arith.constant 8 : i32
    return
  }
  func.func @transform_0(%arg0: i32, %arg1: memref<32xi32, #tpu.memory_space<smem>>) -> (i32, i32) {
    %c0_i32 = arith.constant 0 : i32
    %c0_i32_0 = arith.constant 0 : i32
    %c0_i32_1 = arith.constant 0 : i32
    return %c0_i32, %c0_i32_0 : i32, i32
  }
  func.func @transform_1(%arg0: i32, %arg1: memref<32xi32, #tpu.memory_space<smem>>) -> (i32, i32) {
    %c0_i32 = arith.constant 0 : i32
    %c0_i32_0 = arith.constant 0 : i32
    return %arg0, %c0_i32 : i32, i32
  }
}

</mosaic_0001>

<llo_original>
// kernel: tpu_custom_call.1
$region0: #{tpu_custom_call.1}
  #allocation0 [shape = 'u32[]', space=smem, size = 0x4, offset = 0x4, fixed_abs, tag = 'smem constant byte address 0x4 - core index']
  #allocation1 [shape = 'u32[144,128]{1,0:T(1,128)}', space=vmem, size = 0x12000, scoped, tag = 'internal scratch']
  #allocation2 [shape = 's32[1]{0}', space=sflag, size = 0x4, scoped, tag = 'scoped memory for tpu_custom_call.1']
  #allocation3 [shape = 'u8[512]{0}', space=smem, size = 0x200, scoped, tag = 'prefetched SMEM operand 0']
  %s0 = inlined_call_operand.hbm [shape: s32[32], index: 0, kind: input, shape index: {}]
  %s1 = inlined_call_operand.hbm [shape: f32[22,128], index: 1, kind: input, shape index: {}]
  %s2 = inlined_call_operand.hbm [shape: f32[8,192], index: 2, kind: output, shape index: {}]
  %s3 = sld [smem:[#allocation0]]
  $region29: #{tpu_custom_call.1} parent=0
    _
  %s5 = ssub.s32 1, %s3
  %s6 = scalar_select 0, %s5, %s3
  %8 = dma.hbm_to_smem %s0, 16, [#allocation3], [#allocation2]
  %9 = dma.done [#allocation2], 16
  %10 = sfence
  $region1: #{tpu_custom_call.1} parent=0
    #allocation4 [shape = 'u8[12288]{0}', space=vmem, size = 0x3000, scoped, tag = 'input window, operand 1, single buffered']
    #allocation5 [shape = 's32[1]{0}', space=sflag, size = 0x4, scoped, tag = 'scoped memory for tpu_custom_call.1']
    #allocation6 [shape = 's32[1]{0}', space=sflag, size = 0x4, scoped, tag = 'scoped memory for tpu_custom_call.1']
    #allocation7 [shape = 'u8[8192]{0}', space=vmem, size = 0x2000, scoped, tag = 'output window, operand 0, single buffered']
    %11 = vsyncpa [#allocation5], 0
    %12 = vsyncpa [#allocation6], 0
    // Predicated region
    $region2: #{tpu_custom_call.1} parent=1 // pred_check
      _
    $region3: #{tpu_custom_call.1} parent=1 // pred_check_branch
      %14 = sbr.rel (0) target = $region5
    $region4: #{tpu_custom_call.1} parent=1 // pred_region
      %s16 = ssub.s32 384, 384
      %17 = vsyncadd [#allocation5], %s16
      %s18 = sshll.u32 [#allocation4], 4
      %s19 = int_to_ptr.vmem [resolvable:$true] %s18
      %24 = dma.hbm_to_vmem [thread:$0]  %s1, 384, %s19, [#allocation5], 128, 128, 8
    $region5: #{tpu_custom_call.1} parent=1 // pred_fallthru
      _
    // Predicated region
    $region6: #{tpu_custom_call.1} parent=1 // pred_check
      _
    $region7: #{tpu_custom_call.1} parent=1 // pred_check_branch
      %26 = sbr.rel (0) target = $region9
    $region8: #{tpu_custom_call.1} parent=1 // pred_region
      %27 = dma.done [#allocation5], 384
    $region9: #{tpu_custom_call.1} parent=1 // pred_fallthru
      _
    %s28 = smul.u32 0, 8
    loop: start=0, step=1, limit=8
    $region10: #{tpu_custom_call.1} parent=1 // loop_pre_header
      _
    $region11: #{tpu_custom_call.1} parent=1 // loop_header
      %s30 = sphi 0, %s34
      %p31 = scmp.ge.s32.totalorder %s30, 8
    $region12: #{tpu_custom_call.1} parent=1 // loop_header_branch
      %33 = sbr.rel (%p31) target = $region16
    $region13: #{tpu_custom_call.1} parent=1 // loop_body
      %s35 = sadd.s32 %s28, %s30
      %p36 = scmp.lt.s32.totalorder %s35, 7
      %s37 = scalar_select %p36, %s35, 7
      %s38 = smul.u32 %s37, 4
      %s39 = sld [smem:[#allocation3 + %s38]]
      %s40 = scalar_lea.vmem [#allocation4], %s39
      %v41 = vld [vmem:[%s40] sm:$0x1]
      %s42 = sadd.s32 %s38, 1
      %s43 = sld [smem:[#allocation3 + %s42]]
      %s44 = scalar_lea.vmem [#allocation4], %s43
      %v45 = vld [vmem:[%s44] sm:$0x1]
      %s46 = sadd.s32 %s38, 2
      %s47 = sld [smem:[#allocation3 + %s46]]
      %s48 = scalar_lea.vmem [#allocation4], %s47
      %v49 = vld [vmem:[%s48] sm:$0x1]
      %s50 = sadd.s32 %s38, 3
      %s51 = sld [smem:[#allocation3 + %s50]]
      %s52 = scalar_lea.vmem [#allocation4], %s51
      %v53 = vld [vmem:[%s52] sm:$0x1]
      %55 = vrot.lane.b32.xlu0 %v45, 32
      %v56 = vpop.permute.xlu0 %55
      %v58 = vmul.f32 %v41, %v56
      %60 = vrot.lane.b32.xlu0 %v49, 64
      %v61 = vpop.permute.xlu0 %60
      %v63 = vmul.f32 %v41, %v61
      %65 = vrot.lane.b32.xlu0 %v53, 96
      %v66 = vpop.permute.xlu0 %65
      %v68 = vmul.f32 %v41, %v66
      %69 = vrot.lane.b32.xlu0 %v49, 32
      %v70 = vpop.permute.xlu0 %69
      %v72 = vmul.f32 %v45, %v70
      %73 = vrot.lane.b32.xlu0 %v53, 64
      %v74 = vpop.permute.xlu0 %73
      %v76 = vmul.f32 %v45, %v74
      %77 = vrot.lane.b32.xlu0 %v53, 32
      %v78 = vpop.permute.xlu0 %77
      %v80 = vmul.f32 %v49, %v78
      %82 = vrot.lane.b32.xlu0 %v58, 96
      %v83 = vpop.permute.xlu0 %82
      %86 = vrot.lane.b32.xlu0 %v63, 96
      %v87 = vpop.permute.xlu0 %86
      %90 = vrot.lane.b32.xlu0 %v68, 96
      %v91 = vpop.permute.xlu0 %90
      %94 = vrot.lane.b32.xlu0 %v72, 32
      %v95 = vpop.permute.xlu0 %94
      %98 = vrot.lane.b32.xlu0 %v76, 32
      %v99 = vpop.permute.xlu0 %98
      %102 = vrot.lane.b32.xlu0 %v80, 64
      %v103 = vpop.permute.xlu0 %102
      %vm105 = vcmask 261120
      %v106 = vsel %vm105, %v83, %v87
      %vm107 = vcmask 523264
      %v108 = vsel %vm107, %v106, %v91
      %vm109 = vcmask 785408
      %v110 = vsel %vm109, %v108, %v95
      %v111 = vsel %vm105, %v99, %v103
      %p112 = scmp.lt.s32.totalorder %s35, 8
      // Predicated region
      $region17: #{tpu_custom_call.1} parent=13 // pred_check
        %p113 = pneg %p112
      $region18: #{tpu_custom_call.1} parent=13 // pred_check_branch
        %115 = sbr.rel (%p113) target = $region20
      $region19: #{tpu_custom_call.1} parent=13 // pred_region
        %v118 = vcombine.low %v110, %v111
        %v120 = vunpack.c.l.s4 1966171168
        %v121 = vunpack.c.0.s8 %v120
        %v122 = vlaneseq
        %v123 = vshrl.u32 %v122, 7
        %v124 = vsub.s32 %v121, %v123
        %v125 = vrot.slane %v118, %v124
        %v127 = vunpack.c.l.s4 1966171168
        %v128 = vunpack.c.0.s8 %v127
        %v129 = vlaneseq
        %v130 = vshrl.u32 %v129, 7
        %v131 = vsub.s32 %v128, %v130
        %v132 = vrot.slane %v125, %v131
        %v134 = vlaneseq
        %vm135 = vcmp.ge.s32.totalorder %v134, 0
        %vm136 = vcmp.lt.s32.totalorder %v134, 192
        %vm137 = vmand %vm135, %vm136
        %s138 = sshra.s32 %s30, 3
        %s139 = sand.u32 %s30, 7
        %s140 = sshra.s32 %s30, 3
        %s141 = sand.u32 %s30, 7
        %s142 = smul.u32 %s138, 2
        %s143 = smul.u32 %s142, 8
        %s144 = sadd.s32 %s143, %s141
        %s145 = scalar_lea.vmem [#allocation7], %s144
        %146 = vst.msk [vmem:[%s145] ss:$8 sm:$0x3] %vm137, %v132
        %147 = vst.msk [vmem:[%s145] ss:$8 sm:$0x0] %vm137, %v132
      $region20: #{tpu_custom_call.1} parent=13 // pred_fallthru
        _
    $region14: #{tpu_custom_call.1} parent=1 // loop_footer
      %s34 = sadd.s32 1, %s30
    $region15: #{tpu_custom_call.1} parent=1 // loop_footer_branch
      %29 = sbr.rel target = $region11
    $region16: #{tpu_custom_call.1} parent=1 // loop_exit
      _
    // Predicated region
    $region21: #{tpu_custom_call.1} parent=1 // pred_check
      _
    $region22: #{tpu_custom_call.1} parent=1 // pred_check_branch
      %149 = sbr.rel (0) target = $region24
    $region23: #{tpu_custom_call.1} parent=1 // pred_region
      %s151 = ssub.s32 256, 256
      %152 = vsyncadd [#allocation6], %s151
      %s154 = sshll.u32 [#allocation7], 4
      %s155 = int_to_ptr.vmem [resolvable:$true] %s154
      %157 = dma.vmem_to_hbm [thread:$0]  %s155, 256, %s2, [#allocation6]
    $region24: #{tpu_custom_call.1} parent=1 // pred_fallthru
      _
    // Predicated region
    $region25: #{tpu_custom_call.1} parent=1 // pred_check
      _
    $region26: #{tpu_custom_call.1} parent=1 // pred_check_branch
      %159 = sbr.rel (0) target = $region28
    $region27: #{tpu_custom_call.1} parent=1 // pred_region
      %160 = dma.done [#allocation6], 256
    $region28: #{tpu_custom_call.1} parent=1 // pred_fallthru
      _
    %161 = vsyncpa [#allocation5], 1
    %162 = vsyncpa [#allocation6], 1

</llo_original>
